<compile_context>
chip_gen: v5e
topology: v5e:2x2
jax: 0.10.0
libtpu: 0.0.40
codegen_flags: <defaults>
</compile_context>

<pallas_src>
import jax
import jax.numpy as jnp
from jax.experimental import pallas as pl
from jax.experimental.pallas import tpu as pltpu


# --------------------------------------------------------------------------- kernels
def _make_gather_kernel(tm, f_dim, d):
    """Build a row-gather (+ optional fused feature concat) kernel.

    Kernel refs (scalar-prefetch first, then inputs, outputs, scratch):
      ids_ref    : SMEM (Np,) int32        -- scalar-prefetched row indices
      feats_ref  : VMEM (tm, f_dim) f32    -- only when f_dim > 0
      table_ref  : VMEM (V, d)      f32    -- fused embedding table (resident block)
      out_ref    : VMEM (tm, f_dim + d) f32
      emb_scratch: VMEM (tm, d)     f32    -- only when f_dim > 0
    """
    if f_dim:
        def kernel(ids_ref, feats_ref, table_ref, out_ref, emb_scratch):
            i = pl.program_id(0)
            base = i * tm
            # True gather: one dynamic-sublane slice per row (no one-hot matmul).
            for r in range(tm):  # tm is small & static -> unrolled
                idx = ids_ref[base + r]
                emb_scratch[pl.ds(r, 1), :] = table_ref[pl.ds(idx, 1), :]
            # Fused concat: write the whole (tm, f_dim + d) output slab in-kernel.
            out_ref[:, 0:f_dim] = feats_ref[...]
            out_ref[:, f_dim:f_dim + d] = emb_scratch[...]
        return kernel
    else:
        def kernel(ids_ref, table_ref, out_ref):
            i = pl.program_id(0)
            base = i * tm
            for r in range(tm):
                idx = ids_ref[base + r]
                out_ref[pl.ds(r, 1), :] = table_ref[pl.ds(idx, 1), :]
        return kernel


def _gather_embed(idx, feats, fused_table, *, input_dim, tm=8):
    """Gather fused_table rows by idx and (optionally) concat feats, via Pallas."""
    N = idx.shape[0]
    V, D = fused_table.shape
    n_blocks = pl.cdiv(N, tm)
    Np = n_blocks * tm
    pad = Np - N
    out_dim = input_dim + D

    # Clamp indices so a bad id cannot read out of bounds inside the kernel
    # (there is no runtime bounds check on VMEM refs).
    idx = jnp.clip(idx.astype(jnp.int32), 0, V - 1)
    if pad:
        idx = jnp.concatenate([idx, jnp.zeros((pad,), jnp.int32)])

    kernel = _make_gather_kernel(tm, input_dim, D)

    if input_dim:
        feats_p = feats.astype(jnp.float32)
        if pad:
            feats_p = jnp.concatenate(
                [feats_p, jnp.zeros((pad, input_dim), jnp.float32)], axis=0)
        in_specs = [
            pl.BlockSpec((tm, input_dim), lambda i, ids: (i, 0)),  # feats row block
            pl.BlockSpec((V, D), lambda i, ids: (0, 0)),           # fused table, resident
        ]
        scratch_shapes = [pltpu.VMEM((tm, D), jnp.float32)]
        operands = (idx, feats_p, fused_table)
    else:
        in_specs = [pl.BlockSpec((V, D), lambda i, ids: (0, 0))]
        scratch_shapes = []
        operands = (idx, fused_table)

    out = pl.pallas_call(
        kernel,
        out_shape=jax.ShapeDtypeStruct((Np, out_dim), jnp.float32),
        grid_spec=pltpu.PrefetchScalarGridSpec(
            num_scalar_prefetch=1,                 # ids live in SMEM, not VMEM
            grid=(n_blocks,),
            in_specs=in_specs,
            out_specs=pl.BlockSpec((tm, out_dim), lambda i, ids: (i, 0)),
            scratch_shapes=scratch_shapes,
        ),
        compiler_params=pltpu.CompilerParams(
            dimension_semantics=("parallel",),     # row axis shards across v7x's 2 TCs
            vmem_limit_bytes=32 * 1024 * 1024,     # safe on v5e/v6e/v7x for these tiles
        ),
    )(*operands)
    return out[:N] if pad else out


# --------------------------------------------------------------------------- params
def init_params(key, n_nodes, embedding_dim):
    """Deterministic parameter init (shapes match nn.Embedding / nn.Linear)."""
    k1, k2, k3 = jax.random.split(key, 3)
    table = jax.random.normal(k1, (n_nodes + 1, embedding_dim), jnp.float32)
    bound = 1.0 / (embedding_dim ** 0.5)
    fc_w = jax.random.uniform(k2, (embedding_dim, embedding_dim), jnp.float32,
                              -bound, bound)           # (out, in) like nn.Linear
    fc_b = jax.random.uniform(k3, (embedding_dim,), jnp.float32, -bound, bound)
    return {"table": table, "fc_w": fc_w, "fc_b": fc_b}


def fuse_params(params):
    """Fold the fc Linear into the embedding table (done once, reused every forward)."""
    fused = jnp.dot(params["table"], params["fc_w"].T,
                    precision=jax.lax.Precision.HIGHEST) + params["fc_b"][None, :]
    return {"fused_table": fused.astype(jnp.float32)}


# --------------------------------------------------------------------------- forward
def node_embedding_prep(ids, feats, fused_params, *, n_nodes, input_dim, layer_idx=0):
    """Forward pass equivalent to NodeEmbeddingPrep.forward."""
    fused_table = fused_params["fused_table"]
    D = fused_table.shape[1]
    N = ids.shape[0]

    if layer_idx > 0:
        return _gather_embed(ids, feats, fused_table, input_dim=input_dim)

    # layer_idx == 0: ids.clone().zero_() + n_nodes -> every row uses index n_nodes,
    # so all output embedding rows are identical. Broadcast one fused row; no kernel.
    embs = jnp.broadcast_to(fused_table[n_nodes][None, :], (N, D))
    if input_dim:
        return jnp.concatenate([feats, embs], axis=1)
    return embs


# --------------------------------------------------------------------------- demo
if __name__ == "__main__":
    n_nodes = 10
    input_dim = 4
    embedding_dim = 64          # module default
    N = 8

    key = jax.random.PRNGKey(0)
    k_param, k_ids, k_feats, k_ids2, k_feats2 = jax.random.split(key, 5)

    params = init_params(k_param, n_nodes, embedding_dim)
    fused = fuse_params(params)  # fused once, reused across all forward calls

    ids = jax.random.randint(k_ids, (N,), 0, n_nodes, dtype=jnp.int32)
    feats = jax.random.normal(k_feats, (N, input_dim), jnp.float32)

    # layer_idx == 0 path (constant embedding index n_nodes, short-circuited)
    out0 = node_embedding_prep(ids, feats, fused,
                               n_nodes=n_nodes, input_dim=input_dim, layer_idx=0)
    # layer_idx > 0 path (real id lookup through the Pallas gather kernel)
    out1 = node_embedding_prep(ids, feats, fused,
                               n_nodes=n_nodes, input_dim=input_dim, layer_idx=1)
    jax.block_until_ready((out0, out1))

    # Pure-JAX reference (unfused: gather raw table, then Linear).
    def ref(idx_vec, f):
        embs = jnp.dot(params["table"][idx_vec], params["fc_w"].T,
                       precision=jax.lax.Precision.HIGHEST) + params["fc_b"]
        return jnp.concatenate([f, embs], axis=1)

    ref0 = ref(jnp.full((N,), n_nodes, jnp.int32), feats)
    ref1 = ref(ids, feats)

    assert out0.shape == (N, input_dim + embedding_dim)
    assert out1.shape == (N, input_dim + embedding_dim)
    assert jnp.allclose(out0, ref0, atol=1e-5, rtol=1e-5)
    assert jnp.allclose(out1, ref1, atol=1e-5, rtol=1e-5)

    # Second case: non-multiple-of-tm batch exercises padding + multi-block grid.
    N2 = 13
    ids2 = jax.random.randint(k_ids2, (N2,), 0, n_nodes, dtype=jnp.int32)
    feats2 = jax.random.normal(k_feats2, (N2, input_dim), jnp.float32)
    out2 = node_embedding_prep(ids2, feats2, fused,
                               n_nodes=n_nodes, input_dim=input_dim, layer_idx=1)
    jax.block_until_ready(out2)
    assert out2.shape == (N2, input_dim + embedding_dim)
    assert jnp.allclose(out2, ref(ids2, feats2), atol=1e-5, rtol=1e-5)

    print("KERNEL_OK")
</pallas_src>

<mosaic_0001>
module attributes {stable_mosaic.version = 11 : i64} {
  func.func @kernel(%arg0: i32, %arg1: memref<8xi32, #tpu.memory_space<smem>>, %arg2: memref<8x4xf32, #tpu.memory_space<vmem>>, %arg3: memref<11x64xf32, #tpu.memory_space<vmem>>, %arg4: memref<8x68xf32, #tpu.memory_space<vmem>>, %arg5: memref<8x64xf32, #tpu.memory_space<vmem>>) attributes {dimension_semantics = [#tpu.dimension_semantics<parallel>], iteration_bounds = array<i64: 1>, scalar_prefetch = 1 : i64, scratch_operands = 1 : i64, tpu.core_type = #tpu.core_type<tc>, window_params = [{transform_indices = @transform_0, window_bounds = array<i64: 8, 4>}, {pipeline_mode = #tpu.pipeline_mode<synchronous>, transform_indices = @transform_1, window_bounds = array<i64: 11, 64>}, {transform_indices = @transform_2, window_bounds = array<i64: 8, 68>}]} {
    %c8_i32 = arith.constant 8 : i32
    %0 = arith.muli %arg0, %c8_i32 : i32
    %c0_i32 = arith.constant 0 : i32
    %1 = arith.addi %0, %c0_i32 : i32
    %2 = arith.index_cast %1 : i32 to index
    %3 = memref.load %arg1[%2] : memref<8xi32, #tpu.memory_space<smem>>
    %4 = arith.index_cast %3 : i32 to index
    %c0 = arith.constant 0 : index
    %5 = vector.load %arg3[%4, %c0] : memref<11x64xf32, #tpu.memory_space<vmem>>, vector<1x64xf32>
    %c0_0 = arith.constant 0 : index
    %c0_1 = arith.constant 0 : index
    %6 = vector.load %arg5[%c0_0, %c0_1] : memref<8x64xf32, #tpu.memory_space<vmem>>, vector<1x64xf32>
    tpu.vector_store %arg5[%c0_0, %c0_1], %5 {strides = array<i32>} : memref<8x64xf32, #tpu.memory_space<vmem>>, vector<1x64xf32>,
    %c1_i32 = arith.constant 1 : i32
    %7 = arith.addi %0, %c1_i32 : i32
    %8 = arith.index_cast %7 : i32 to index
    %9 = memref.load %arg1[%8] : memref<8xi32, #tpu.memory_space<smem>>
    %10 = arith.index_cast %9 : i32 to index
    %c0_2 = arith.constant 0 : index
    %11 = vector.load %arg3[%10, %c0_2] : memref<11x64xf32, #tpu.memory_space<vmem>>, vector<1x64xf32>
    %c1 = arith.constant 1 : index
    %c0_3 = arith.constant 0 : index
    %12 = vector.load %arg5[%c1, %c0_3] : memref<8x64xf32, #tpu.memory_space<vmem>>, vector<1x64xf32>
    tpu.vector_store %arg5[%c1, %c0_3], %11 {strides = array<i32>} : memref<8x64xf32, #tpu.memory_space<vmem>>, vector<1x64xf32>,
    %c2_i32 = arith.constant 2 : i32
    %13 = arith.addi %0, %c2_i32 : i32
    %14 = arith.index_cast %13 : i32 to index
    %15 = memref.load %arg1[%14] : memref<8xi32, #tpu.memory_space<smem>>
    %16 = arith.index_cast %15 : i32 to index
    %c0_4 = arith.constant 0 : index
    %17 = vector.load %arg3[%16, %c0_4] : memref<11x64xf32, #tpu.memory_space<vmem>>, vector<1x64xf32>
    %c2 = arith.constant 2 : index
    %c0_5 = arith.constant 0 : index
    %18 = vector.load %arg5[%c2, %c0_5] : memref<8x64xf32, #tpu.memory_space<vmem>>, vector<1x64xf32>
    tpu.vector_store %arg5[%c2, %c0_5], %17 {strides = array<i32>} : memref<8x64xf32, #tpu.memory_space<vmem>>, vector<1x64xf32>,
    %c3_i32 = arith.constant 3 : i32
    %19 = arith.addi %0, %c3_i32 : i32
    %20 = arith.index_cast %19 : i32 to index
    %21 = memref.load %arg1[%20] : memref<8xi32, #tpu.memory_space<smem>>
    %22 = arith.index_cast %21 : i32 to index
    %c0_6 = arith.constant 0 : index
    %23 = vector.load %arg3[%22, %c0_6] : memref<11x64xf32, #tpu.memory_space<vmem>>, vector<1x64xf32>
    %c3 = arith.constant 3 : index
    %c0_7 = arith.constant 0 : index
    %24 = vector.load %arg5[%c3, %c0_7] : memref<8x64xf32, #tpu.memory_space<vmem>>, vector<1x64xf32>
    tpu.vector_store %arg5[%c3, %c0_7], %23 {strides = array<i32>} : memref<8x64xf32, #tpu.memory_space<vmem>>, vector<1x64xf32>,
    %c4_i32 = arith.constant 4 : i32
    %25 = arith.addi %0, %c4_i32 : i32
    %26 = arith.index_cast %25 : i32 to index
    %27 = memref.load %arg1[%26] : memref<8xi32, #tpu.memory_space<smem>>
    %28 = arith.index_cast %27 : i32 to index
    %c0_8 = arith.constant 0 : index
    %29 = vector.load %arg3[%28, %c0_8] : memref<11x64xf32, #tpu.memory_space<vmem>>, vector<1x64xf32>
    %c4 = arith.constant 4 : index
    %c0_9 = arith.constant 0 : index
    %30 = vector.load %arg5[%c4, %c0_9] : memref<8x64xf32, #tpu.memory_space<vmem>>, vector<1x64xf32>
    tpu.vector_store %arg5[%c4, %c0_9], %29 {strides = array<i32>} : memref<8x64xf32, #tpu.memory_space<vmem>>, vector<1x64xf32>,
    %c5_i32 = arith.constant 5 : i32
    %31 = arith.addi %0, %c5_i32 : i32
    %32 = arith.index_cast %31 : i32 to index
    %33 = memref.load %arg1[%32] : memref<8xi32, #tpu.memory_space<smem>>
    %34 = arith.index_cast %33 : i32 to index
    %c0_10 = arith.constant 0 : index
    %35 = vector.load %arg3[%34, %c0_10] : memref<11x64xf32, #tpu.memory_space<vmem>>, vector<1x64xf32>
    %c5 = arith.constant 5 : index
    %c0_11 = arith.constant 0 : index
    %36 = vector.load %arg5[%c5, %c0_11] : memref<8x64xf32, #tpu.memory_space<vmem>>, vector<1x64xf32>
    tpu.vector_store %arg5[%c5, %c0_11], %35 {strides = array<i32>} : memref<8x64xf32, #tpu.memory_space<vmem>>, vector<1x64xf32>,
    %c6_i32 = arith.constant 6 : i32
    %37 = arith.addi %0, %c6_i32 : i32
    %38 = arith.index_cast %37 : i32 to index
    %39 = memref.load %arg1[%38] : memref<8xi32, #tpu.memory_space<smem>>
    %40 = arith.index_cast %39 : i32 to index
    %c0_12 = arith.constant 0 : index
    %41 = vector.load %arg3[%40, %c0_12] : memref<11x64xf32, #tpu.memory_space<vmem>>, vector<1x64xf32>
    %c6 = arith.constant 6 : index
    %c0_13 = arith.constant 0 : index
    %42 = vector.load %arg5[%c6, %c0_13] : memref<8x64xf32, #tpu.memory_space<vmem>>, vector<1x64xf32>
    tpu.vector_store %arg5[%c6, %c0_13], %41 {strides = array<i32>} : memref<8x64xf32, #tpu.memory_space<vmem>>, vector<1x64xf32>,
    %c7_i32 = arith.constant 7 : i32
    %43 = arith.addi %0, %c7_i32 : i32
    %44 = arith.index_cast %43 : i32 to index
    %45 = memref.load %arg1[%44] : memref<8xi32, #tpu.memory_space<smem>>
    %46 = arith.index_cast %45 : i32 to index
    %c0_14 = arith.constant 0 : index
    %47 = vector.load %arg3[%46, %c0_14] : memref<11x64xf32, #tpu.memory_space<vmem>>, vector<1x64xf32>
    %c7 = arith.constant 7 : index
    %c0_15 = arith.constant 0 : index
    %48 = vector.load %arg5[%c7, %c0_15] : memref<8x64xf32, #tpu.memory_space<vmem>>, vector<1x64xf32>
    tpu.vector_store %arg5[%c7, %c0_15], %47 {strides = array<i32>} : memref<8x64xf32, #tpu.memory_space<vmem>>, vector<1x64xf32>,
    %c0_16 = arith.constant 0 : index
    %c0_17 = arith.constant 0 : index
    %49 = vector.load %arg2[%c0_16, %c0_17] : memref<8x4xf32, #tpu.memory_space<vmem>>, vector<8x4xf32>
    %c0_18 = arith.constant 0 : index
    %c0_19 = arith.constant 0 : index
    %50 = vector.load %arg4[%c0_18, %c0_19] : memref<8x68xf32, #tpu.memory_space<vmem>>, vector<8x4xf32>
    tpu.vector_store %arg4[%c0_18, %c0_19], %49 {strides = array<i32>} : memref<8x68xf32, #tpu.memory_space<vmem>>, vector<8x4xf32>,
    %c0_20 = arith.constant 0 : index
    %c0_21 = arith.constant 0 : index
    %51 = vector.load %arg5[%c0_20, %c0_21] : memref<8x64xf32, #tpu.memory_space<vmem>>, vector<8x64xf32>
    %c0_22 = arith.constant 0 : index
    %c4_23 = arith.constant 4 : index
    %52 = vector.load %arg4[%c0_22, %c4_23] : memref<8x68xf32, #tpu.memory_space<vmem>>, vector<8x64xf32>
    tpu.vector_store %arg4[%c0_22, %c4_23], %51 {strides = array<i32>} : memref<8x68xf32, #tpu.memory_space<vmem>>, vector<8x64xf32>,
    return
  }
  func.func @transform_0(%arg0: i32, %arg1: memref<8xi32, #tpu.memory_space<smem>>) -> (i32, i32) {
    %c0_i32 = arith.constant 0 : i32
    %c0_i32_0 = arith.constant 0 : i32
    return %arg0, %c0_i32 : i32, i32
  }
  func.func @transform_1(%arg0: i32, %arg1: memref<8xi32, #tpu.memory_space<smem>>) -> (i32, i32) {
    %c0_i32 = arith.constant 0 : i32
    %c0_i32_0 = arith.constant 0 : i32
    %c0_i32_1 = arith.constant 0 : i32
    return %c0_i32, %c0_i32_0 : i32, i32
  }
  func.func @transform_2(%arg0: i32, %arg1: memref<8xi32, #tpu.memory_space<smem>>) -> (i32, i32) {
    %c0_i32 = arith.constant 0 : i32
    %c0_i32_0 = arith.constant 0 : i32
    return %arg0, %c0_i32 : i32, i32
  }
}

</mosaic_0001>

<llo_original>
// kernel: tpu_custom_call.1
$region0: #{tpu_custom_call.1}
  #allocation0 [shape = 'u32[]', space=smem, size = 0x4, offset = 0x4, fixed_abs, tag = 'smem constant byte address 0x4 - core index']
  #allocation1 [shape = 'u32[72,128]{1,0:T(1,128)}', space=vmem, size = 0x9000, scoped, tag = 'internal scratch']
  #allocation2 [shape = 'f32[8,64]{1,0:T(8,128)}', space=vmem, size = 0x1000, scoped, tag = 'scratch operand']
  #allocation3 [shape = 's32[1]{0}', space=sflag, size = 0x4, scoped, tag = 'scoped memory for tpu_custom_call.1']
  #allocation4 [shape = 'u8[512]{0}', space=smem, size = 0x200, scoped, tag = 'prefetched SMEM operand 0']
  %s0 = inlined_call_operand.vmem [shape: s32[8], index: 0, kind: input, shape index: {}]
  %s1 = inlined_call_operand.vmem [shape: f32[8,4], index: 1, kind: input, shape index: {}]
  %s2 = inlined_call_operand.hbm [shape: f32[11,64], index: 2, kind: input, shape index: {}]
  %s3 = inlined_call_operand.hbm [shape: f32[8,68], index: 3, kind: output, shape index: {}]
  %s4 = sld [smem:[#allocation0]]
  $region22: #{tpu_custom_call.1} parent=0
    _
  %s6 = ssub.s32 1, %s4
  %s7 = scalar_select 0, %s6, %s4
  %s9 = sshll.u32 %s0, 4
  %s10 = int_to_ptr.vmem [resolvable:$true] %s9
  %12 = dma.vmem_to_smem %s10, 16, [#allocation4], [#allocation3]
  %14 = dma.done [#allocation3], 16
  %15 = sfence
  $region1: #{tpu_custom_call.1} parent=0
    #allocation5 [shape = 'u8[8192]{0}', space=vmem, size = 0x2000, scoped, tag = 'input window, operand 2, single buffered']
    #allocation6 [shape = 's32[1]{0}', space=sflag, size = 0x4, scoped, tag = 'scoped memory for tpu_custom_call.1']
    #allocation7 [shape = 's32[1]{0}', space=sflag, size = 0x4, scoped, tag = 'scoped memory for tpu_custom_call.1']
    #allocation8 [shape = 'u8[4096]{0}', space=vmem, size = 0x1000, scoped, tag = 'output window, operand 0, single buffered']
    %16 = vsyncpa [#allocation6], 0
    %17 = vsyncpa [#allocation7], 0
    // Predicated region
    $region2: #{tpu_custom_call.1} parent=1 // pred_check
      _
    $region3: #{tpu_custom_call.1} parent=1 // pred_check_branch
      %19 = sbr.rel (0) target = $region5
    $region4: #{tpu_custom_call.1} parent=1 // pred_region
      _
    $region5: #{tpu_custom_call.1} parent=1 // pred_fallthru
      _
    // Predicated region
    $region6: #{tpu_custom_call.1} parent=1 // pred_check
      _
    $region7: #{tpu_custom_call.1} parent=1 // pred_check_branch
      %21 = sbr.rel (0) target = $region9
    $region8: #{tpu_custom_call.1} parent=1 // pred_region
      %23 = vsyncadd [#allocation6], 0
      %s24 = sshll.u32 %s2, 4
      %s25 = int_to_ptr.hbm [resolvable:$true] %s24
      %s26 = sshll.u32 [#allocation5], 4
      %s27 = int_to_ptr.vmem [resolvable:$true] %s26
      %32 = dma.hbm_to_vmem [thread:$0]  %s25, 256, %s27, [#allocation6], 128, 128, 8
    $region9: #{tpu_custom_call.1} parent=1 // pred_fallthru
      _
    // Predicated region
    $region10: #{tpu_custom_call.1} parent=1 // pred_check
      _
    $region11: #{tpu_custom_call.1} parent=1 // pred_check_branch
      %34 = sbr.rel (0) target = $region13
    $region12: #{tpu_custom_call.1} parent=1 // pred_region
      %36 = dma.done [#allocation6], 256
    $region13: #{tpu_custom_call.1} parent=1 // pred_fallthru
      _
    %s37 = smul.u32 0, 8
    %s38 = sld [smem:[#allocation4 + %s37]]
    %s39 = scalar_lea.vmem [#allocation5], %s38
    %v40 = vld [vmem:[%s39] sm:$0x1]
    %vm41 = vcmask 516096
    %42 = vst.msk [vmem:[#allocation2] sm:$0x1] %vm41, %v40
    %s43 = sadd.s32 %s37, 1
    %s44 = sld [smem:[#allocation4 + %s43]]
    %s45 = scalar_lea.vmem [#allocation5], %s44
    %v46 = vld [vmem:[%s45] sm:$0x1]
    %47 = vst.msk [vmem:[#allocation2 + $0x1] sm:$0x1] %vm41, %v46
    %s48 = sadd.s32 %s37, 2
    %s49 = sld [smem:[#allocation4 + %s48]]
    %s50 = scalar_lea.vmem [#allocation5], %s49
    %v51 = vld [vmem:[%s50] sm:$0x1]
    %52 = vst.msk [vmem:[#allocation2 + $0x2] sm:$0x1] %vm41, %v51
    %s53 = sadd.s32 %s37, 3
    %s54 = sld [smem:[#allocation4 + %s53]]
    %s55 = scalar_lea.vmem [#allocation5], %s54
    %v56 = vld [vmem:[%s55] sm:$0x1]
    %57 = vst.msk [vmem:[#allocation2 + $0x3] sm:$0x1] %vm41, %v56
    %s58 = sadd.s32 %s37, 4
    %s59 = sld [smem:[#allocation4 + %s58]]
    %s60 = scalar_lea.vmem [#allocation5], %s59
    %v61 = vld [vmem:[%s60] sm:$0x1]
    %62 = vst.msk [vmem:[#allocation2 + $0x4] sm:$0x1] %vm41, %v61
    %s63 = sadd.s32 %s37, 5
    %s64 = sld [smem:[#allocation4 + %s63]]
    %s65 = scalar_lea.vmem [#allocation5], %s64
    %v66 = vld [vmem:[%s65] sm:$0x1]
    %67 = vst.msk [vmem:[#allocation2 + $0x5] sm:$0x1] %vm41, %v66
    %s68 = sadd.s32 %s37, 6
    %s69 = sld [smem:[#allocation4 + %s68]]
    %s70 = scalar_lea.vmem [#allocation5], %s69
    %v71 = vld [vmem:[%s70] sm:$0x1]
    %72 = vst.msk [vmem:[#allocation2 + $0x6] sm:$0x1] %vm41, %v71
    %s73 = sadd.s32 %s37, 7
    %s74 = sld [smem:[#allocation4 + %s73]]
    %s75 = scalar_lea.vmem [#allocation5], %s74
    %v76 = vld [vmem:[%s75] sm:$0x1]
    %77 = vst.msk [vmem:[#allocation2 + $0x7] sm:$0x1] %vm41, %v76
    %v78 = vld [vmem:[%s1] sm:$0xff]
    %vm79 = vcmask 31744
    %80 = vst.msk [vmem:[#allocation8] sm:$0xff] %vm79, %v78
    %v81 = vld [vmem:[#allocation2] sm:$0xff]
    %83 = vrot.lane.b32.xlu0 %v81, 4
    %v84 = vpop.permute.xlu0 %83
    %vm86 = vcmask 556064
    %87 = vst.msk [vmem:[#allocation8] sm:$0xff] %vm86, %v84
    // Predicated region
    $region14: #{tpu_custom_call.1} parent=1 // pred_check
      _
    $region15: #{tpu_custom_call.1} parent=1 // pred_check_branch
      %89 = sbr.rel (0) target = $region17
    $region16: #{tpu_custom_call.1} parent=1 // pred_region
      %91 = vsyncadd [#allocation7], 0
      %s93 = sshll.u32 [#allocation8], 4
      %s94 = int_to_ptr.vmem [resolvable:$true] %s93
      %s95 = sshll.u32 %s3, 4
      %s96 = int_to_ptr.hbm [resolvable:$true] %s95
      %98 = dma.vmem_to_hbm [thread:$0]  %s94, 128, %s96, [#allocation7]
    $region17: #{tpu_custom_call.1} parent=1 // pred_fallthru
      _
    // Predicated region
    $region18: #{tpu_custom_call.1} parent=1 // pred_check
      _
    $region19: #{tpu_custom_call.1} parent=1 // pred_check_branch
      %100 = sbr.rel (0) target = $region21
    $region20: #{tpu_custom_call.1} parent=1 // pred_region
      %102 = dma.done [#allocation7], 128
    $region21: #{tpu_custom_call.1} parent=1 // pred_fallthru
      _
    %103 = vsyncpa [#allocation6], 1
    %104 = vsyncpa [#allocation7], 1

</llo_original>
